<compile_context>
chip_gen: v6e
topology: v6e:2x2x1
jax: 0.10.0
libtpu: 0.0.40
codegen_flags: <defaults>
</compile_context>

<pallas_src>
import functools

import jax
import jax.numpy as jnp
from jax.experimental import pallas as pl
from jax.experimental.pallas import tpu as pltpu


_SQRT_2_INV = 0.7071067811865476


def _erf_approx(x):
    # Abramowitz & Stegun 7.1.26 rational approximation, max abs error ~1.5e-7
    # (plus ~2^-12 from the approx reciprocal - far below test tolerance).
    p = 0.3275911
    a1, a2, a3, a4, a5 = (0.254829592, -0.284496736, 1.421413741,
                          -1.453152027, 1.061405429)
    ax = jnp.abs(x)
    # EUP vrcp instead of an f32 divide: the divide was burning VALU/EUP cycles
    # in the epilogue; the EUP slot is otherwise idle while the MXU runs.
    t = pl.reciprocal(1.0 + p * ax, approx=True)
    poly = ((((a5 * t + a4) * t + a3) * t + a2) * t + a1) * t
    y = 1.0 - poly * jnp.exp(-(ax * ax))
    return jnp.where(x >= 0.0, y, -y)


def _gelu_exact(x):
    # PyTorch F.gelu default ("none"): x * 0.5 * (1 + erf(x / sqrt(2))).
    return x * 0.5 * (1.0 + _erf_approx(x * _SQRT_2_INV))


# ----------------------------------------------------------------------------
# Kernels
# ----------------------------------------------------------------------------
def _geglu_fused_kernel(x_ref, w_ref, b_ref, o_ref, *, out_dim):
    # One wide-N matmul; the h[:, :out_dim] / h[:, out_dim:] split is a free
    # vreg-boundary slice because out_dim % 128 == 0.
    h = jnp.dot(x_ref[...], w_ref[...],
                preferred_element_type=jnp.float32) + b_ref[...]
    h1, h2 = h[:, :out_dim], h[:, out_dim:]
    o_ref[...] = (h1 * _gelu_exact(h2)).astype(o_ref.dtype)


def _geglu_fused_ktiled_kernel(x_ref, w_ref, b_ref, o_ref, acc_ref, *, out_dim):
    # Trailing "arbitrary" K axis: accumulate into a resident (tm, 2*out_dim)
    # f32 scratch, finalize (bias + GEGLU) on the last K step.
    k = pl.program_id(1)

    @pl.when(k == 0)
    def _():
        acc_ref[...] = jnp.zeros_like(acc_ref)

    acc_ref[...] += jnp.dot(x_ref[...], w_ref[...],
                            preferred_element_type=jnp.float32)

    @pl.when(k == pl.num_programs(1) - 1)
    def _():
        h = acc_ref[...] + b_ref[...]
        h1, h2 = h[:, :out_dim], h[:, out_dim:]
        o_ref[...] = (h1 * _gelu_exact(h2)).astype(o_ref.dtype)


def _geglu_split_kernel(x_ref, w1_ref, w2_ref, b1_ref, b2_ref, o_ref):
    # Fallback for out_dim not a multiple of 128: two N=out_dim dots against
    # pre-split weight halves (keeps the output stores lane-dense).
    x = x_ref[...]
    h1 = jnp.dot(x, w1_ref[...], preferred_element_type=jnp.float32) + b1_ref[...]
    h2 = jnp.dot(x, w2_ref[...], preferred_element_type=jnp.float32) + b2_ref[...]
    o_ref[...] = (h1 * _gelu_exact(h2)).astype(o_ref.dtype)


# ----------------------------------------------------------------------------
# Wrapper
# ----------------------------------------------------------------------------
def _round_up(x, m):
    return (x + m - 1) // m * m


def _vmem_limit_bytes():
    # ~85% of physical VMEM, capped at 112 MiB:
    #   v5e/v6e (128 MiB physical) -> ~108 MiB; v7x (64 MiB physical) -> ~54 MiB.
    try:
        cap = int(pltpu.get_tpu_info().vmem_capacity_bytes)
        return min(int(cap * 0.85), 112 * 1024 * 1024)
    except Exception:
        return 48 * 1024 * 1024  # safe on every generation, > all scoped defaults


def condition_embedding(cond, w, b, *, block_m=512, block_k=512,
                        weight_resident_max_bytes=14 * 1024 * 1024,
                        operand_dtype=None):
    """ConditionEmbedding forward: x1 * gelu(x2) with [x1|x2] = cond @ w + b.

    Args:
      cond: float array (..., cond_dim).
      w:    (cond_dim, 2*out_dim) - transposed nn.Linear weight.
      b:    (2*out_dim,)          - nn.Linear bias.
      operand_dtype: optional matmul-operand dtype (e.g. jnp.bfloat16); the
        accumulation and the GEGLU epilogue stay in f32.
    """
    lead_shape = cond.shape[:-1]
    out_dtype = cond.dtype
    cond2d = cond.reshape(-1, cond.shape[-1])
    B, cond_dim = cond2d.shape
    assert w.shape[0] == cond_dim and w.shape[1] % 2 == 0
    two_out = w.shape[1]
    out_dim = two_out // 2
    assert b.shape == (two_out,)

    if operand_dtype is not None:
        cond2d = cond2d.astype(operand_dtype)
        w = w.astype(operand_dtype)
    b2d = b.astype(jnp.float32).reshape(1, two_out)

    # Batch tile: multiple of 8 sublanes; padded batch divides the tile.
    tm = min(block_m, _round_up(B, 8))
    B_pad = _round_up(B, tm)
    if B_pad != B:
        cond2d = jnp.pad(cond2d, ((0, B_pad - B), (0, 0)))
    num_m = B_pad // tm

    fused_ok = (out_dim % 128 == 0)
    w_bytes = w.size * w.dtype.itemsize
    k_tiled = fused_ok and (w_bytes > weight_resident_max_bytes)

    if k_tiled:
        tk = min(block_k, _round_up(cond_dim, 128))
        assert tk % 128 == 0
        K_pad = _round_up(cond_dim, tk)
        if K_pad != cond_dim:  # zero-padding contributes nothing to the dot
            cond2d = jnp.pad(cond2d, ((0, 0), (0, K_pad - cond_dim)))
            w = jnp.pad(w, ((0, K_pad - cond_dim), (0, 0)))
        num_k = K_pad // tk

    vmem_limit = _vmem_limit_bytes()
    cost = pl.CostEstimate(
        flops=2 * B_pad * cond_dim * two_out,
        transcendentals=2 * B_pad * out_dim,  # exp + approx reciprocal per element
        bytes_accessed=(cond2d.size * cond2d.dtype.itemsize
                        + w.size * w.dtype.itemsize
                        + b2d.size * b2d.dtype.itemsize
                        + B_pad * out_dim * jnp.dtype(out_dtype).itemsize),
    )

    def run(single_buffer):
        def const_spec(shape, index_map):
            # Grid-invariant blocks (weights / biases): single-buffer them so
            # default double-buffering doesn't double resident-weight VMEM.
            if single_buffer:
                return pl.BlockSpec(shape, index_map, pipeline_mode=pl.Buffered(1))
            return pl.BlockSpec(shape, index_map)

        if k_tiled:
            kernel = functools.partial(_geglu_fused_ktiled_kernel, out_dim=out_dim)
            return pl.pallas_call(
                kernel,
                out_shape=jax.ShapeDtypeStruct((B_pad, out_dim), out_dtype),
                grid_spec=pltpu.PrefetchScalarGridSpec(
                    num_scalar_prefetch=0,
                    grid=(num_m, num_k),
                    in_specs=[
                        pl.BlockSpec((tm, tk), lambda i, k: (i, k)),
                        pl.BlockSpec((tk, two_out), lambda i, k: (k, 0)),
                        const_spec((1, two_out), lambda i, k: (0, 0)),
                    ],
                    out_specs=pl.BlockSpec((tm, out_dim), lambda i, k: (i, 0)),
                    scratch_shapes=[pltpu.VMEM((tm, two_out), jnp.float32)],
                ),
                compiler_params=pltpu.CompilerParams(
                    dimension_semantics=("parallel", "arbitrary"),
                    vmem_limit_bytes=vmem_limit,
                ),
                cost_estimate=cost,
            )(cond2d, w, b2d)

        if fused_ok:
            kernel = functools.partial(_geglu_fused_kernel, out_dim=out_dim)
            return pl.pallas_call(
                kernel,
                out_shape=jax.ShapeDtypeStruct((B_pad, out_dim), out_dtype),
                grid_spec=pltpu.PrefetchScalarGridSpec(
                    num_scalar_prefetch=0,
                    grid=(num_m,),
                    in_specs=[
                        pl.BlockSpec((tm, cond_dim), lambda i: (i, 0)),
                        const_spec((cond_dim, two_out), lambda i: (0, 0)),
                        const_spec((1, two_out), lambda i: (0, 0)),
                    ],
                    out_specs=pl.BlockSpec((tm, out_dim), lambda i: (i, 0)),
                ),
                compiler_params=pltpu.CompilerParams(
                    dimension_semantics=("parallel",),
                    vmem_limit_bytes=vmem_limit,
                ),
                cost_estimate=cost,
            )(cond2d, w, b2d)

        # Non-lane-aligned out_dim: split weights/bias in the wrapper (static slices).
        w1, w2 = w[:, :out_dim], w[:, out_dim:]
        b1, b2 = b2d[:, :out_dim], b2d[:, out_dim:]
        return pl.pallas_call(
            _geglu_split_kernel,
            out_shape=jax.ShapeDtypeStruct((B_pad, out_dim), out_dtype),
            grid_spec=pltpu.PrefetchScalarGridSpec(
                num_scalar_prefetch=0,
                grid=(num_m,),
                in_specs=[
                    pl.BlockSpec((tm, cond_dim), lambda i: (i, 0)),
                    const_spec((cond_dim, out_dim), lambda i: (0, 0)),
                    const_spec((cond_dim, out_dim), lambda i: (0, 0)),
                    const_spec((1, out_dim), lambda i: (0, 0)),
                    const_spec((1, out_dim), lambda i: (0, 0)),
                ],
                out_specs=pl.BlockSpec((tm, out_dim), lambda i: (i, 0)),
            ),
            compiler_params=pltpu.CompilerParams(
                dimension_semantics=("parallel",),
                vmem_limit_bytes=vmem_limit,
            ),
            cost_estimate=cost,
        )(cond2d, w1, w2, b1, b2)

    try:
        out = run(single_buffer=True)
    except Exception:
        # Fallback for runtimes that reject single-buffered BlockSpecs.
        out = run(single_buffer=False)

    out = out[:B]
    return out.reshape(*lead_shape, out_dim)


if __name__ == "__main__":
    key = jax.random.PRNGKey(0)
    k_x, k_w, k_b, k_x2, k_w2, k_b2 = jax.random.split(key, 6)

    def reference(cond, w, b, out_dim):
        x_proj = cond @ w + b
        x1, x2 = x_proj[:, :out_dim], x_proj[:, out_dim:]
        return x1 * (x2 * 0.5 * (1.0 + jax.scipy.special.erf(x2 * _SQRT_2_INV)))

    # --- Primary test: fused single-matmul path, f32 operands. -------------
    batch, cond_dim, out_dim = 8, 128, 128
    cond = jax.random.normal(k_x, (batch, cond_dim), dtype=jnp.float32)
    # PyTorch nn.Linear(cond_dim, 2*out_dim) weight is (2*out_dim, cond_dim);
    # we store its transpose so that y = cond @ w + b.
    w = (0.05 * jax.random.normal(k_w, (cond_dim, 2 * out_dim))).astype(jnp.float32)
    b = (0.1 * jax.random.normal(k_b, (2 * out_dim,))).astype(jnp.float32)
    ref = reference(cond, w, b, out_dim)

    out = jax.block_until_ready(condition_embedding(cond, w, b))
    assert out.shape == (batch, out_dim), out.shape
    err = float(jnp.max(jnp.abs(out - ref)))
    assert jnp.allclose(out, ref, atol=2e-2, rtol=2e-2), err

    # --- K-tiled accumulator path, forced at small shapes (2 K steps). -----
    cond_dim_k = 256
    cond_k = jax.random.normal(k_x2, (batch, cond_dim_k), dtype=jnp.float32)
    w_k = (0.05 * jax.random.normal(k_w2, (cond_dim_k, 2 * out_dim))).astype(jnp.float32)
    b_k = (0.1 * jax.random.normal(k_b2, (2 * out_dim,))).astype(jnp.float32)
    ref_k = reference(cond_k, w_k, b_k, out_dim)
    out_k = jax.block_until_ready(
        condition_embedding(cond_k, w_k, b_k, block_k=128,
                            weight_resident_max_bytes=0))
    err_k = float(jnp.max(jnp.abs(out_k - ref_k)))
    assert jnp.allclose(out_k, ref_k, atol=2e-2, rtol=2e-2), err_k

    # --- bf16-operand path (f32 accumulate, f32 GEGLU epilogue). -----------
    out_bf16 = jax.block_until_ready(
        condition_embedding(cond, w, b, operand_dtype=jnp.bfloat16))
    err_bf16 = float(jnp.max(jnp.abs(out_bf16 - ref)))
    assert jnp.allclose(out_bf16, ref, atol=5e-2, rtol=5e-2), err_bf16

    print("KERNEL_OK")
</pallas_src>

<mosaic_0001>
module attributes {stable_mosaic.version = 11 : i64} {
  func.func @_geglu_fused_kernel(%arg0: i32, %arg1: memref<8x128xf32, #tpu.memory_space<vmem>>, %arg2: memref<128x256xf32, #tpu.memory_space<vmem>>, %arg3: memref<1x256xf32, #tpu.memory_space<vmem>>, %arg4: memref<8x128xf32, #tpu.memory_space<vmem>>) attributes {dimension_semantics = [#tpu.dimension_semantics<parallel>], iteration_bounds = array<i64: 1>, scalar_prefetch = 0 : i64, scratch_operands = 0 : i64, tpu.core_type = #tpu.core_type<tc>, window_params = [{transform_indices = @transform_0, window_bounds = array<i64: 8, 128>}, {pipeline_mode = #tpu.pipeline_mode<synchronous>, transform_indices = @transform_1, window_bounds = array<i64: 128, 256>}, {pipeline_mode = #tpu.pipeline_mode<synchronous>, transform_indices = @transform_2, window_bounds = array<i64: 1, 256>}, {transform_indices = @transform_3, window_bounds = array<i64: 8, 128>}]} {
    %c0 = arith.constant 0 : index
    %c0_0 = arith.constant 0 : index
    %0 = vector.load %arg1[%c0, %c0_0] : memref<8x128xf32, #tpu.memory_space<vmem>>, vector<8x128xf32>
    %c0_1 = arith.constant 0 : index
    %c0_2 = arith.constant 0 : index
    %1 = vector.load %arg2[%c0_1, %c0_2] : memref<128x256xf32, #tpu.memory_space<vmem>>, vector<128x256xf32>
    %cst = arith.constant dense<0.000000e+00> : vector<8x256xf32>
    %2 = tpu.matmul %0, %1, %cst {dimension_numbers = #tpu.dot_dimension_numbers<[1], [0], [0], [1], [0, 0, 1, 1], [], []>} : vector<8x128xf32>, vector<128x256xf32>, vector<8x256xf32> -> vector<8x256xf32>
    %c0_3 = arith.constant 0 : index
    %c0_4 = arith.constant 0 : index
    %3 = vector.load %arg3[%c0_3, %c0_4] : memref<1x256xf32, #tpu.memory_space<vmem>>, vector<1x256xf32>
    %4 = vector.broadcast %3 : vector<1x256xf32> to vector<8x256xf32>
    %5 = arith.addf %2, %4 : vector<8x256xf32>
    %6 = vector.extract_strided_slice %5 {offsets = [0, 0], sizes = [8, 128], strides = [1, 1]} : vector<8x256xf32> to vector<8x128xf32>
    %7 = vector.extract_strided_slice %5 {offsets = [0, 128], sizes = [8, 128], strides = [1, 1]} : vector<8x256xf32> to vector<8x128xf32>
    %cst_5 = arith.constant 5.000000e-01 : f32
    %8 = vector.broadcast %cst_5 : f32 to vector<8x128xf32>
    %9 = arith.mulf %7, %8 : vector<8x128xf32>
    %cst_6 = arith.constant 0.707106769 : f32
    %10 = vector.broadcast %cst_6 : f32 to vector<8x128xf32>
    %11 = arith.mulf %7, %10 : vector<8x128xf32>
    %12 = math.absf %11 : vector<8x128xf32>
    %cst_7 = arith.constant 0.327591091 : f32
    %13 = vector.broadcast %cst_7 : f32 to vector<8x128xf32>
    %14 = arith.mulf %13, %12 : vector<8x128xf32>
    %cst_8 = arith.constant 1.000000e+00 : f32
    %15 = vector.broadcast %cst_8 : f32 to vector<8x128xf32>
    %16 = arith.addf %15, %14 : vector<8x128xf32>
    %17 = tpu.reciprocal %16 {approx = true} : vector<8x128xf32> -> vector<8x128xf32>
    %cst_9 = arith.constant 1.06140542 : f32
    %18 = vector.broadcast %cst_9 : f32 to vector<8x128xf32>
    %19 = arith.mulf %18, %17 : vector<8x128xf32>
    %cst_10 = arith.constant -1.45315206 : f32
    %20 = vector.broadcast %cst_10 : f32 to vector<8x128xf32>
    %21 = arith.addf %19, %20 : vector<8x128xf32>
    %22 = arith.mulf %21, %17 : vector<8x128xf32>
    %cst_11 = arith.constant 1.42141378 : f32
    %23 = vector.broadcast %cst_11 : f32 to vector<8x128xf32>
    %24 = arith.addf %22, %23 : vector<8x128xf32>
    %25 = arith.mulf %24, %17 : vector<8x128xf32>
    %cst_12 = arith.constant -0.284496725 : f32
    %26 = vector.broadcast %cst_12 : f32 to vector<8x128xf32>
    %27 = arith.addf %25, %26 : vector<8x128xf32>
    %28 = arith.mulf %27, %17 : vector<8x128xf32>
    %cst_13 = arith.constant 0.254829586 : f32
    %29 = vector.broadcast %cst_13 : f32 to vector<8x128xf32>
    %30 = arith.addf %28, %29 : vector<8x128xf32>
    %31 = arith.mulf %30, %17 : vector<8x128xf32>
    %32 = arith.mulf %12, %12 : vector<8x128xf32>
    %cst_14 = arith.constant 0.000000e+00 : f32
    %33 = vector.broadcast %cst_14 : f32 to vector<8x128xf32>
    %34 = arith.subf %33, %32 : vector<8x128xf32>
    %35 = math.exp %34 : vector<8x128xf32>
    %36 = arith.mulf %31, %35 : vector<8x128xf32>
    %cst_15 = arith.constant 1.000000e+00 : f32
    %37 = vector.broadcast %cst_15 : f32 to vector<8x128xf32>
    %38 = arith.subf %37, %36 : vector<8x128xf32>
    %cst_16 = arith.constant 0.000000e+00 : f32
    %39 = vector.broadcast %cst_16 : f32 to vector<8x128xf32>
    %40 = arith.cmpf oge, %11, %39 : vector<8x128xf32>
    %cst_17 = arith.constant 0.000000e+00 : f32
    %41 = vector.broadcast %cst_17 : f32 to vector<8x128xf32>
    %42 = arith.subf %41, %38 : vector<8x128xf32>
    %43 = arith.select %40, %38, %42 : vector<8x128xi1>, vector<8x128xf32>
    %cst_18 = arith.constant 1.000000e+00 : f32
    %44 = vector.broadcast %cst_18 : f32 to vector<8x128xf32>
    %45 = arith.addf %44, %43 : vector<8x128xf32>
    %46 = arith.mulf %9, %45 : vector<8x128xf32>
    %47 = arith.mulf %6, %46 : vector<8x128xf32>
    %c0_19 = arith.constant 0 : index
    %c0_20 = arith.constant 0 : index
    %48 = vector.load %arg4[%c0_19, %c0_20] : memref<8x128xf32, #tpu.memory_space<vmem>>, vector<8x128xf32>
    tpu.vector_store %arg4[%c0_19, %c0_20], %47 {strides = array<i32>} : memref<8x128xf32, #tpu.memory_space<vmem>>, vector<8x128xf32>,
    return
  }
  func.func @transform_0(%arg0: i32) -> (i32, i32) {
    %c0_i32 = arith.constant 0 : i32
    %c0_i32_0 = arith.constant 0 : i32
    return %arg0, %c0_i32 : i32, i32
  }
  func.func @transform_1(%arg0: i32) -> (i32, i32) {
    %c0_i32 = arith.constant 0 : i32
    %c0_i32_0 = arith.constant 0 : i32
    %c0_i32_1 = arith.constant 0 : i32
    return %c0_i32, %c0_i32_0 : i32, i32
  }
  func.func @transform_2(%arg0: i32) -> (i32, i32) {
    %c0_i32 = arith.constant 0 : i32
    %c0_i32_0 = arith.constant 0 : i32
    %c0_i32_1 = arith.constant 0 : i32
    return %c0_i32, %c0_i32_0 : i32, i32
  }
  func.func @transform_3(%arg0: i32) -> (i32, i32) {
    %c0_i32 = arith.constant 0 : i32
    %c0_i32_0 = arith.constant 0 : i32
    return %arg0, %c0_i32 : i32, i32
  }
}

module attributes {stable_mosaic.version = 11 : i64} {
  func.func @_geglu_fused_kernel(%arg0: i32, %arg1: memref<8x128xf32, #tpu.memory_space<vmem>>, %arg2: memref<128x256xf32, #tpu.memory_space<vmem>>, %arg3: memref<1x256xf32, #tpu.memory_space<vmem>>, %arg4: memref<8x128xf32, #tpu.memory_space<vmem>>) attributes {dimension_semantics = [#tpu.dimension_semantics<parallel>], iteration_bounds = array<i64: 1>, scalar_prefetch = 0 : i64, scratch_operands = 0 : i64, tpu.core_type = #tpu.core_type<tc>, window_params = [{transform_indices = @transform_0, window_bounds = array<i64: 8, 128>}, {pipeline_mode = #tpu.pipeline_mode<synchronous>, transform_indices = @transform_1, window_bounds = array<i64: 128, 256>}, {pipeline_mode = #tpu.pipeline_mode<synchronous>, transform_indices = @transform_2, window_bounds = array<i64: 1, 256>}, {transform_indices = @transform_3, window_bounds = array<i64: 8, 128>}]} {
    %c0 = arith.constant 0 : index
    %c0_0 = arith.constant 0 : index
    %0 = vector.load %arg1[%c0, %c0_0] : memref<8x128xf32, #tpu.memory_space<vmem>>, vector<8x128xf32>
    %c0_1 = arith.constant 0 : index
    %c0_2 = arith.constant 0 : index
    %1 = vector.load %arg2[%c0_1, %c0_2] : memref<128x256xf32, #tpu.memory_space<vmem>>, vector<128x256xf32>
    %cst = arith.constant dense<0.000000e+00> : vector<8x256xf32>
    %2 = tpu.matmul %0, %1, %cst {dimension_numbers = #tpu.dot_dimension_numbers<[1], [0], [0], [1], [0, 0, 1, 1], [], []>} : vector<8x128xf32>, vector<128x256xf32>, vector<8x256xf32> -> vector<8x256xf32>
    %c0_3 = arith.constant 0 : index
    %c0_4 = arith.constant 0 : index
    %3 = vector.load %arg3[%c0_3, %c0_4] : memref<1x256xf32, #tpu.memory_space<vmem>>, vector<1x256xf32>
    %4 = vector.broadcast %3 : vector<1x256xf32> to vector<8x256xf32>
    %5 = arith.addf %2, %4 : vector<8x256xf32>
    %6 = vector.extract_strided_slice %5 {offsets = [0, 0], sizes = [8, 128], strides = [1, 1]} : vector<8x256xf32> to vector<8x128xf32>
    %7 = vector.extract_strided_slice %5 {offsets = [0, 128], sizes = [8, 128], strides = [1, 1]} : vector<8x256xf32> to vector<8x128xf32>
    %cst_5 = arith.constant 5.000000e-01 : f32
    %8 = vector.broadcast %cst_5 : f32 to vector<8x128xf32>
    %9 = arith.mulf %7, %8 : vector<8x128xf32>
    %cst_6 = arith.constant 0.707106769 : f32
    %10 = vector.broadcast %cst_6 : f32 to vector<8x128xf32>
    %11 = arith.mulf %7, %10 : vector<8x128xf32>
    %12 = math.absf %11 : vector<8x128xf32>
    %cst_7 = arith.constant 0.327591091 : f32
    %13 = vector.broadcast %cst_7 : f32 to vector<8x128xf32>
    %14 = arith.mulf %13, %12 : vector<8x128xf32>
    %cst_8 = arith.constant 1.000000e+00 : f32
    %15 = vector.broadcast %cst_8 : f32 to vector<8x128xf32>
    %16 = arith.addf %15, %14 : vector<8x128xf32>
    %17 = tpu.reciprocal %16 {approx = true} : vector<8x128xf32> -> vector<8x128xf32>
    %cst_9 = arith.constant 1.06140542 : f32
    %18 = vector.broadcast %cst_9 : f32 to vector<8x128xf32>
    %19 = arith.mulf %18, %17 : vector<8x128xf32>
    %cst_10 = arith.constant -1.45315206 : f32
    %20 = vector.broadcast %cst_10 : f32 to vector<8x128xf32>
    %21 = arith.addf %19, %20 : vector<8x128xf32>
    %22 = arith.mulf %21, %17 : vector<8x128xf32>
    %cst_11 = arith.constant 1.42141378 : f32
    %23 = vector.broadcast %cst_11 : f32 to vector<8x128xf32>
    %24 = arith.addf %22, %23 : vector<8x128xf32>
    %25 = arith.mulf %24, %17 : vector<8x128xf32>
    %cst_12 = arith.constant -0.284496725 : f32
    %26 = vector.broadcast %cst_12 : f32 to vector<8x128xf32>
    %27 = arith.addf %25, %26 : vector<8x128xf32>
    %28 = arith.mulf %27, %17 : vector<8x128xf32>
    %cst_13 = arith.constant 0.254829586 : f32
    %29 = vector.broadcast %cst_13 : f32 to vector<8x128xf32>
    %30 = arith.addf %28, %29 : vector<8x128xf32>
    %31 = arith.mulf %30, %17 : vector<8x128xf32>
    %32 = arith.mulf %12, %12 : vector<8x128xf32>
    %cst_14 = arith.constant 0.000000e+00 : f32
    %33 = vector.broadcast %cst_14 : f32 to vector<8x128xf32>
    %34 = arith.subf %33, %32 : vector<8x128xf32>
    %35 = math.exp %34 : vector<8x128xf32>
    %36 = arith.mulf %31, %35 : vector<8x128xf32>
    %cst_15 = arith.constant 1.000000e+00 : f32
    %37 = vector.broadcast %cst_15 : f32 to vector<8x128xf32>
    %38 = arith.subf %37, %36 : vector<8x128xf32>
    %cst_16 = arith.constant 0.000000e+00 : f32
    %39 = vector.broadcast %cst_16 : f32 to vector<8x128xf32>
    %40 = arith.cmpf oge, %11, %39 : vector<8x128xf32>
    %cst_17 = arith.constant 0.000000e+00 : f32
    %41 = vector.broadcast %cst_17 : f32 to vector<8x128xf32>
    %42 = arith.subf %41, %38 : vector<8x128xf32>
    %43 = arith.select %40, %38, %42 : vector<8x128xi1>, vector<8x128xf32>
    %cst_18 = arith.constant 1.000000e+00 : f32
    %44 = vector.broadcast %cst_18 : f32 to vector<8x128xf32>
    %45 = arith.addf %44, %43 : vector<8x128xf32>
    %46 = arith.mulf %9, %45 : vector<8x128xf32>
    %47 = arith.mulf %6, %46 : vector<8x128xf32>
    %c0_19 = arith.constant 0 : index
    %c0_20 = arith.constant 0 : index
    %48 = vector.load %arg4[%c0_19, %c0_20] : memref<8x128xf32, #tpu.memory_space<vmem>>, vector<8x128xf32>
    tpu.vector_store %arg4[%c0_19, %c0_20], %47 {strides = array<i32>} : memref<8x128xf32, #tpu.memory_space<vmem>>, vector<8x128xf32>,
    return
  }
  func.func @transform_0(%arg0: i32) -> (i32, i32) {
    %c0_i32 = arith.constant 0 : i32
    %c0_i32_0 = arith.constant 0 : i32
    return %arg0, %c0_i32 : i32, i32
  }
  func.func @transform_1(%arg0: i32) -> (i32, i32) {
    %c0_i32 = arith.constant 0 : i32
    %c0_i32_0 = arith.constant 0 : i32
    %c0_i32_1 = arith.constant 0 : i32
    return %c0_i32, %c0_i32_0 : i32, i32
  }
  func.func @transform_2(%arg0: i32) -> (i32, i32) {
    %c0_i32 = arith.constant 0 : i32
    %c0_i32_0 = arith.constant 0 : i32
    %c0_i32_1 = arith.constant 0 : i32
    return %c0_i32, %c0_i32_0 : i32, i32
  }
  func.func @transform_3(%arg0: i32) -> (i32, i32) {
    %c0_i32 = arith.constant 0 : i32
    %c0_i32_0 = arith.constant 0 : i32
    return %arg0, %c0_i32 : i32, i32
  }
}

</mosaic_0001>

<llo_original>
// kernel: tpu_custom_call.1
$region0: #{tpu_custom_call.1}
  #allocation0 [shape = 'u32[]', space=smem, size = 0x4, offset = 0x4, fixed_abs, tag = 'smem constant byte address 0x4 - core index']
  #allocation1 [shape = 'u32[144,128]{1,0:T(1,128)}', space=vmem, size = 0x12000, scoped, tag = 'internal scratch']
  %s0 = inlined_call_operand.hbm [shape: f32[8,128], index: 0, kind: input, shape index: {}]
  %s1 = inlined_call_operand.hbm [shape: f32[128,256], index: 1, kind: input, shape index: {}]
  %s2 = inlined_call_operand.vmem [shape: f32[1,256], index: 2, kind: input, shape index: {}]
  %s3 = inlined_call_operand.hbm [shape: f32[8,128], index: 3, kind: output, shape index: {}]
  %s4 = sld [smem:[#allocation0]]
  $region30: #{tpu_custom_call.1} parent=0
    _
  %s6 = ssub.s32 1, %s4
  %s7 = scalar_select 0, %s6, %s4
  $region1: #{tpu_custom_call.1} parent=0
    #allocation2 [shape = 'u8[4096]{0}', space=vmem, size = 0x1000, scoped, tag = 'input window, operand 0, single buffered']
    #allocation3 [shape = 's32[1]{0}', space=sflag, size = 0x4, scoped, tag = 'scoped memory for tpu_custom_call.1']
    #allocation4 [shape = 's32[1]{0}', space=sflag, size = 0x4, scoped, tag = 'scoped memory for tpu_custom_call.1']
    #allocation5 [shape = 'u8[131072]{0}', space=vmem, size = 0x20000, scoped, tag = 'input window, operand 1, single buffered']
    #allocation6 [shape = 's32[1]{0}', space=sflag, size = 0x4, scoped, tag = 'scoped memory for tpu_custom_call.1']
    #allocation7 [shape = 'u8[4096]{0}', space=vmem, size = 0x1000, scoped, tag = 'output window, operand 0, single buffered']
    %8 = vsyncpa [#allocation3], 0
    %9 = vsyncpa [#allocation6], 0
    %10 = vsyncpa [#allocation4], 0
    // Predicated region
    $region2: #{tpu_custom_call.1} parent=1 // pred_check
      _
    $region3: #{tpu_custom_call.1} parent=1 // pred_check_branch
      %12 = sbr.rel (0) target = $region5
    $region4: #{tpu_custom_call.1} parent=1 // pred_region
      %s14 = ssub.s32 128, 128
      %15 = vsyncadd [#allocation3], %s14
      %s17 = sshll.u32 [#allocation2], 4
      %s18 = int_to_ptr.vmem [resolvable:$true] %s17
      %20 = dma.hbm_to_vmem [thread:$0]  %s0, 128, %s18, [#allocation3]
    $region5: #{tpu_custom_call.1} parent=1 // pred_fallthru
      _
    // Predicated region
    $region6: #{tpu_custom_call.1} parent=1 // pred_check
      _
    $region7: #{tpu_custom_call.1} parent=1 // pred_check_branch
      %22 = sbr.rel (0) target = $region9
    $region8: #{tpu_custom_call.1} parent=1 // pred_region
      %s24 = ssub.s32 4096, 4096
      %25 = vsyncadd [#allocation6], %s24
      %s26 = sshll.u32 [#allocation5], 4
      %s27 = int_to_ptr.vmem [resolvable:$true] %s26
      %32 = dma.hbm_to_vmem [thread:$0]  %s1, 4096, %s27, [#allocation6], 256, 256, 16
    $region9: #{tpu_custom_call.1} parent=1 // pred_fallthru
      _
    // Predicated region
    $region10: #{tpu_custom_call.1} parent=1 // pred_check
      _
    $region11: #{tpu_custom_call.1} parent=1 // pred_check_branch
      %34 = sbr.rel (0) target = $region13
    $region12: #{tpu_custom_call.1} parent=1 // pred_region
      _
    $region13: #{tpu_custom_call.1} parent=1 // pred_fallthru
      _
    // Predicated region
    $region14: #{tpu_custom_call.1} parent=1 // pred_check
      _
    $region15: #{tpu_custom_call.1} parent=1 // pred_check_branch
      %36 = sbr.rel (0) target = $region17
    $region16: #{tpu_custom_call.1} parent=1 // pred_region
      %37 = dma.done [#allocation3], 128
    $region17: #{tpu_custom_call.1} parent=1 // pred_fallthru
      _
    // Predicated region
    $region18: #{tpu_custom_call.1} parent=1 // pred_check
      _
    $region19: #{tpu_custom_call.1} parent=1 // pred_check_branch
      %39 = sbr.rel (0) target = $region21
    $region20: #{tpu_custom_call.1} parent=1 // pred_region
      %40 = dma.done [#allocation6], 4096
    $region21: #{tpu_custom_call.1} parent=1 // pred_fallthru
      _
    %v41 = vld [vmem:[#allocation2] sm:$0xff]
    %v42 = vld [vmem:[#allocation5] sm:$0xff]
    %v43 = vld [vmem:[#allocation5 + $0x8] sm:$0xff]
    %v44 = vld [vmem:[#allocation5 + $0x10] sm:$0xff]
    %v45 = vld [vmem:[#allocation5 + $0x18] sm:$0xff]
    %v46 = vld [vmem:[#allocation5 + $0x20] sm:$0xff]
    %v47 = vld [vmem:[#allocation5 + $0x28] sm:$0xff]
    %v48 = vld [vmem:[#allocation5 + $0x30] sm:$0xff]
    %v49 = vld [vmem:[#allocation5 + $0x38] sm:$0xff]
    %v50 = vld [vmem:[#allocation5 + $0x40] sm:$0xff]
    %v51 = vld [vmem:[#allocation5 + $0x48] sm:$0xff]
    %v52 = vld [vmem:[#allocation5 + $0x50] sm:$0xff]
    %v53 = vld [vmem:[#allocation5 + $0x58] sm:$0xff]
    %v54 = vld [vmem:[#allocation5 + $0x60] sm:$0xff]
    %v55 = vld [vmem:[#allocation5 + $0x68] sm:$0xff]
    %v56 = vld [vmem:[#allocation5 + $0x70] sm:$0xff]
    %v57 = vld [vmem:[#allocation5 + $0x78] sm:$0xff]
    %v58 = vld [vmem:[#allocation5 + $0x80] sm:$0xff]
    %v59 = vld [vmem:[#allocation5 + $0x88] sm:$0xff]
    %v60 = vld [vmem:[#allocation5 + $0x90] sm:$0xff]
    %v61 = vld [vmem:[#allocation5 + $0x98] sm:$0xff]
    %v62 = vld [vmem:[#allocation5 + $0xa0] sm:$0xff]
    %v63 = vld [vmem:[#allocation5 + $0xa8] sm:$0xff]
    %v64 = vld [vmem:[#allocation5 + $0xb0] sm:$0xff]
    %v65 = vld [vmem:[#allocation5 + $0xb8] sm:$0xff]
    %v66 = vld [vmem:[#allocation5 + $0xc0] sm:$0xff]
    %v67 = vld [vmem:[#allocation5 + $0xc8] sm:$0xff]
    %v68 = vld [vmem:[#allocation5 + $0xd0] sm:$0xff]
    %v69 = vld [vmem:[#allocation5 + $0xd8] sm:$0xff]
    %v70 = vld [vmem:[#allocation5 + $0xe0] sm:$0xff]
    %v71 = vld [vmem:[#allocation5 + $0xe8] sm:$0xff]
    %v72 = vld [vmem:[#allocation5 + $0xf0] sm:$0xff]
    %v73 = vld [vmem:[#allocation5 + $0xf8] sm:$0xff]
    %v74 = vld [vmem:[%s2] sm:$0x3]
    %v76 = vlaneseq
    %v77 = vshrl.u32 %v76, 7
    %v78 = vsub.s32 0, %v77
    %v79 = vrot.slane %v74, %v78
    %v80 = vlaneseq
    %v81 = vshrl.u32 %v80, 7
    %v82 = vsub.s32 1, %v81
    %v83 = vrot.slane %v74, %v82
    %86 = vmatprep.subr.mxu0 %v73
    %87 = vmatpush1.msra.mxu0 %v72
    %88 = vmatprep.subr.mxu0 %v71
    %89 = vmatpush1.msra.mxu0 %v70
    %90 = vmatprep.subr.mxu0 %v69
    %91 = vmatpush1.msra.mxu0 %v68
    %92 = vmatprep.subr.mxu0 %v67
    %93 = vmatpush1.msra.mxu0 %v66
    %94 = vmatprep.subr.mxu0 %v65
    %95 = vmatpush1.msra.mxu0 %v64
    %96 = vmatprep.subr.mxu0 %v63
    %97 = vmatpush1.msra.mxu0 %v62
    %98 = vmatprep.subr.mxu0 %v61
    %99 = vmatpush1.msra.mxu0 %v60
    %100 = vmatprep.subr.mxu0 %v59
    %101 = vmatpush1.msra.mxu0 %v58
    %102 = vmatprep.subr.mxu0 %v57
    %103 = vmatpush1.msra.mxu0 %v56
    %104 = vmatprep.subr.mxu0 %v55
    %105 = vmatpush1.msra.mxu0 %v54
    %106 = vmatprep.subr.mxu0 %v53
    %107 = vmatpush1.msra.mxu0 %v52
    %108 = vmatprep.subr.mxu0 %v51
    %109 = vmatpush1.msra.mxu0 %v50
    %110 = vmatprep.subr.mxu0 %v49
    %111 = vmatpush1.msra.mxu0 %v48
    %112 = vmatprep.subr.mxu0 %v47
    %113 = vmatpush1.msra.mxu0 %v46
    %114 = vmatprep.subr.mxu0 %v45
    %115 = vmatpush1.msra.mxu0 %v44
    %116 = vmatprep.subr.mxu0 %v43
    %117 = vmatpush1.msra.mxu0 %v42
    %118 = vmatprep.subr.mxu0 0.0
    %119 = vmatpush2.msra.mxu0 0.0
    %120 = vmatprep.subr.mxu0 0.0
    %121 = vmatpush2.msra.mxu0 0.0
    %122 = vmatprep.subr.mxu0 0.0
    %123 = vmatpush2.msra.mxu0 0.0
    %124 = vmatprep.subr.mxu0 0.0
    %125 = vmatpush2.msra.mxu0 0.0
    %126 = vmatprep.subr.mxu0 0.0
    %127 = vmatpush2.msra.mxu0 0.0
    %128 = vmatprep.subr.mxu0 0.0
    %129 = vmatpush2.msra.mxu0 0.0
    %130 = vmatprep.subr.mxu0 0.0
    %131 = vmatpush2.msra.mxu0 0.0
    %132 = vmatprep.subr.mxu0 0.0
    %133 = vmatpush2.msra.mxu0 0.0
    %134 = vmatprep.subr.mxu0 0.0
    %135 = vmatpush2.msra.mxu0 0.0
    %136 = vmatprep.subr.mxu0 0.0
    %137 = vmatpush2.msra.mxu0 0.0
    %138 = vmatprep.subr.mxu0 0.0
    %139 = vmatpush2.msra.mxu0 0.0
    %140 = vmatprep.subr.mxu0 0.0
    %141 = vmatpush2.msra.mxu0 0.0
    %142 = vmatprep.subr.mxu0 0.0
    %143 = vmatpush2.msra.mxu0 0.0
    %144 = vmatprep.subr.mxu0 0.0
    %145 = vmatpush2.msra.mxu0 0.0
    %146 = vmatprep.subr.mxu0 0.0
    %147 = vmatpush2.msra.mxu0 0.0
    %148 = vmatprep.subr.mxu0 0.0
    %149 = vmatpush2.msra.mxu0 0.0
    %150 = vmatprep.mubr.f32.mxu0 0.0
    %151 = vmatmul.mubr.f32.gmra.mxu0 %v41
    %v152 = vpop.f32.mrf.mxu0
    %v153 = vadd.f32 %v79, %v152
    %v154 = vpop.f32.mrf.mxu0
    %v155 = vadd.f32 %v83, %v154
    %156 = vdwg.mxu0
    %v157 = vmul.f32 %v155, 0.5
    %v158 = vmul.f32 %v155, 0.70710677
    %v159 = vand.u32 2147483647, %v158
    %v160 = vmul.f32 %v159, 0.3275911
    %v161 = vadd.f32 %v160, 1.0
    %v162 = vrcp.pop %v161
    %v163 = vmul.f32 %v162, 1.0614054
    %v164 = vadd.f32 %v163, -1.4531521
    %v165 = vmul.f32 %v164, %v162
    %v166 = vadd.f32 %v165, 1.4214138
    %v167 = vmul.f32 %v166, %v162
    %v168 = vadd.f32 %v167, -0.28449672
    %v169 = vmul.f32 %v168, %v162
    %v170 = vadd.f32 %v169, 0.2548296
    %v171 = vmul.f32 %v170, %v162
    %v172 = vmul.f32 %v159, %v159
    %v173 = vsub.f32 0.0, %v172
    %v174 = vmul.f32 %v173, 1.442695
    %v175 = vpow.pop %v174
    %v176 = vmul.f32 %v171, %v175
    %v177 = vsub.f32 1.0, %v176
    %vm178 = vcmp.ge.f32.partialorder %v158, 0.0
    %v179 = vsub.f32 0.0, %v177
    %v180 = vsel %vm178, %v177, %v179
    %v181 = vadd.f32 %v180, 1.0
    %v182 = vmul.f32 %v157, %v181
    %v183 = vmul.f32 %v153, %v182
    %184 = vst [vmem:[#allocation7] sm:$0xff] %v183
    // Predicated region
    $region22: #{tpu_custom_call.1} parent=1 // pred_check
      _
    $region23: #{tpu_custom_call.1} parent=1 // pred_check_branch
      %186 = sbr.rel (0) target = $region25
    $region24: #{tpu_custom_call.1} parent=1 // pred_region
      %s188 = ssub.s32 128, 128
      %189 = vsyncadd [#allocation4], %s188
      %s191 = sshll.u32 [#allocation7], 4
      %s192 = int_to_ptr.vmem [resolvable:$true] %s191
      %194 = dma.vmem_to_hbm [thread:$0]  %s192, 128, %s3, [#allocation4]
    $region25: #{tpu_custom_call.1} parent=1 // pred_fallthru
      _
    // Predicated region
    $region26: #{tpu_custom_call.1} parent=1 // pred_check
      _
    $region27: #{tpu_custom_call.1} parent=1 // pred_check_branch
      %196 = sbr.rel (0) target = $region29
    $region28: #{tpu_custom_call.1} parent=1 // pred_region
      %197 = dma.done [#allocation4], 128
    $region29: #{tpu_custom_call.1} parent=1 // pred_fallthru
      _
    %198 = vsyncpa [#allocation3], 1
    %199 = vsyncpa [#allocation6], 1
    %200 = vsyncpa [#allocation4], 1

// kernel: tpu_custom_call.1
$region0: #{tpu_custom_call.1}
  #allocation0 [shape = 'u32[]', space=smem, size = 0x4, offset = 0x4, fixed_abs, tag = 'smem constant byte address 0x4 - core index']
  #allocation1 [shape = 'u32[144,128]{1,0:T(1,128)}', space=vmem, size = 0x12000, scoped, tag = 'internal scratch']
  %s0 = inlined_call_operand.hbm [shape: f32[8,128], index: 0, kind: input, shape index: {}]
  %s1 = inlined_call_operand.hbm [shape: f32[128,256], index: 1, kind: input, shape index: {}]
  %s2 = inlined_call_operand.vmem [shape: f32[1,256], index: 2, kind: input, shape index: {}]
  %s3 = inlined_call_operand.hbm [shape: f32[8,128], index: 3, kind: output, shape index: {}]
  %s4 = sld [smem:[#allocation0]]
  $region30: #{tpu_custom_call.1} parent=0
    _
  %s6 = ssub.s32 1, %s4
  %s7 = scalar_select 0, %s6, %s4
  $region1: #{tpu_custom_call.1} parent=0
    #allocation2 [shape = 'u8[4096]{0}', space=vmem, size = 0x1000, scoped, tag = 'input window, operand 0, single buffered']
    #allocation3 [shape = 's32[1]{0}', space=sflag, size = 0x4, scoped, tag = 'scoped memory for tpu_custom_call.1']
    #allocation4 [shape = 's32[1]{0}', space=sflag, size = 0x4, scoped, tag = 'scoped memory for tpu_custom_call.1']
    #allocation5 [shape = 'u8[131072]{0}', space=vmem, size = 0x20000, scoped, tag = 'input window, operand 1, single buffered']
    #allocation6 [shape = 's32[1]{0}', space=sflag, size = 0x4, scoped, tag = 'scoped memory for tpu_custom_call.1']
    #allocation7 [shape = 'u8[4096]{0}', space=vmem, size = 0x1000, scoped, tag = 'output window, operand 0, single buffered']
    %8 = vsyncpa [#allocation3], 0
    %9 = vsyncpa [#allocation6], 0
    %10 = vsyncpa [#allocation4], 0
    // Predicated region
    $region2: #{tpu_custom_call.1} parent=1 // pred_check
      _
    $region3: #{tpu_custom_call.1} parent=1 // pred_check_branch
      %12 = sbr.rel (0) target = $region5
    $region4: #{tpu_custom_call.1} parent=1 // pred_region
      %s14 = ssub.s32 128, 128
      %15 = vsyncadd [#allocation3], %s14
      %s17 = sshll.u32 [#allocation2], 4
      %s18 = int_to_ptr.vmem [resolvable:$true] %s17
      %20 = dma.hbm_to_vmem [thread:$0]  %s0, 128, %s18, [#allocation3]
    $region5: #{tpu_custom_call.1} parent=1 // pred_fallthru
      _
    // Predicated region
    $region6: #{tpu_custom_call.1} parent=1 // pred_check
      _
    $region7: #{tpu_custom_call.1} parent=1 // pred_check_branch
      %22 = sbr.rel (0) target = $region9
    $region8: #{tpu_custom_call.1} parent=1 // pred_region
      %s24 = ssub.s32 4096, 4096
      %25 = vsyncadd [#allocation6], %s24
      %s26 = sshll.u32 [#allocation5], 4
      %s27 = int_to_ptr.vmem [resolvable:$true] %s26
      %32 = dma.hbm_to_vmem [thread:$0]  %s1, 4096, %s27, [#allocation6], 256, 256, 16
    $region9: #{tpu_custom_call.1} parent=1 // pred_fallthru
      _
    // Predicated region
    $region10: #{tpu_custom_call.1} parent=1 // pred_check
      _
    $region11: #{tpu_custom_call.1} parent=1 // pred_check_branch
      %34 = sbr.rel (0) target = $region13
    $region12: #{tpu_custom_call.1} parent=1 // pred_region
      _
    $region13: #{tpu_custom_call.1} parent=1 // pred_fallthru
      _
    // Predicated region
    $region14: #{tpu_custom_call.1} parent=1 // pred_check
      _
    $region15: #{tpu_custom_call.1} parent=1 // pred_check_branch
      %36 = sbr.rel (0) target = $region17
    $region16: #{tpu_custom_call.1} parent=1 // pred_region
      %37 = dma.done [#allocation3], 128
    $region17: #{tpu_custom_call.1} parent=1 // pred_fallthru
      _
    // Predicated region
    $region18: #{tpu_custom_call.1} parent=1 // pred_check
      _
    $region19: #{tpu_custom_call.1} parent=1 // pred_check_branch
      %39 = sbr.rel (0) target = $region21
    $region20: #{tpu_custom_call.1} parent=1 // pred_region
      %40 = dma.done [#allocation6], 4096
    $region21: #{tpu_custom_call.1} parent=1 // pred_fallthru
      _
    %v41 = vld [vmem:[#allocation2] sm:$0xff]
    %v42 = vld [vmem:[#allocation5] sm:$0xff]
    %v43 = vld [vmem:[#allocation5 + $0x8] sm:$0xff]
    %v44 = vld [vmem:[#allocation5 + $0x10] sm:$0xff]
    %v45 = vld [vmem:[#allocation5 + $0x18] sm:$0xff]
    %v46 = vld [vmem:[#allocation5 + $0x20] sm:$0xff]
    %v47 = vld [vmem:[#allocation5 + $0x28] sm:$0xff]
    %v48 = vld [vmem:[#allocation5 + $0x30] sm:$0xff]
    %v49 = vld [vmem:[#allocation5 + $0x38] sm:$0xff]
    %v50 = vld [vmem:[#allocation5 + $0x40] sm:$0xff]
    %v51 = vld [vmem:[#allocation5 + $0x48] sm:$0xff]
    %v52 = vld [vmem:[#allocation5 + $0x50] sm:$0xff]
    %v53 = vld [vmem:[#allocation5 + $0x58] sm:$0xff]
    %v54 = vld [vmem:[#allocation5 + $0x60] sm:$0xff]
    %v55 = vld [vmem:[#allocation5 + $0x68] sm:$0xff]
    %v56 = vld [vmem:[#allocation5 + $0x70] sm:$0xff]
    %v57 = vld [vmem:[#allocation5 + $0x78] sm:$0xff]
    %v58 = vld [vmem:[#allocation5 + $0x80] sm:$0xff]
    %v59 = vld [vmem:[#allocation5 + $0x88] sm:$0xff]
    %v60 = vld [vmem:[#allocation5 + $0x90] sm:$0xff]
    %v61 = vld [vmem:[#allocation5 + $0x98] sm:$0xff]
    %v62 = vld [vmem:[#allocation5 + $0xa0] sm:$0xff]
    %v63 = vld [vmem:[#allocation5 + $0xa8] sm:$0xff]
    %v64 = vld [vmem:[#allocation5 + $0xb0] sm:$0xff]
    %v65 = vld [vmem:[#allocation5 + $0xb8] sm:$0xff]
    %v66 = vld [vmem:[#allocation5 + $0xc0] sm:$0xff]
    %v67 = vld [vmem:[#allocation5 + $0xc8] sm:$0xff]
    %v68 = vld [vmem:[#allocation5 + $0xd0] sm:$0xff]
    %v69 = vld [vmem:[#allocation5 + $0xd8] sm:$0xff]
    %v70 = vld [vmem:[#allocation5 + $0xe0] sm:$0xff]
    %v71 = vld [vmem:[#allocation5 + $0xe8] sm:$0xff]
    %v72 = vld [vmem:[#allocation5 + $0xf0] sm:$0xff]
    %v73 = vld [vmem:[#allocation5 + $0xf8] sm:$0xff]
    %v74 = vld [vmem:[%s2] sm:$0x3]
    %v76 = vlaneseq
    %v77 = vshrl.u32 %v76, 7
    %v78 = vsub.s32 0, %v77
    %v79 = vrot.slane %v74, %v78
    %v80 = vlaneseq
    %v81 = vshrl.u32 %v80, 7
    %v82 = vsub.s32 1, %v81
    %v83 = vrot.slane %v74, %v82
    %86 = vmatprep.subr.mxu0 %v73
    %87 = vmatpush1.msra.mxu0 %v72
    %88 = vmatprep.subr.mxu0 %v71
    %89 = vmatpush1.msra.mxu0 %v70
    %90 = vmatprep.subr.mxu0 %v69
    %91 = vmatpush1.msra.mxu0 %v68
    %92 = vmatprep.subr.mxu0 %v67
    %93 = vmatpush1.msra.mxu0 %v66
    %94 = vmatprep.subr.mxu0 %v65
    %95 = vmatpush1.msra.mxu0 %v64
    %96 = vmatprep.subr.mxu0 %v63
    %97 = vmatpush1.msra.mxu0 %v62
    %98 = vmatprep.subr.mxu0 %v61
    %99 = vmatpush1.msra.mxu0 %v60
    %100 = vmatprep.subr.mxu0 %v59
    %101 = vmatpush1.msra.mxu0 %v58
    %102 = vmatprep.subr.mxu0 %v57
    %103 = vmatpush1.msra.mxu0 %v56
    %104 = vmatprep.subr.mxu0 %v55
    %105 = vmatpush1.msra.mxu0 %v54
    %106 = vmatprep.subr.mxu0 %v53
    %107 = vmatpush1.msra.mxu0 %v52
    %108 = vmatprep.subr.mxu0 %v51
    %109 = vmatpush1.msra.mxu0 %v50
    %110 = vmatprep.subr.mxu0 %v49
    %111 = vmatpush1.msra.mxu0 %v48
    %112 = vmatprep.subr.mxu0 %v47
    %113 = vmatpush1.msra.mxu0 %v46
    %114 = vmatprep.subr.mxu0 %v45
    %115 = vmatpush1.msra.mxu0 %v44
    %116 = vmatprep.subr.mxu0 %v43
    %117 = vmatpush1.msra.mxu0 %v42
    %118 = vmatprep.subr.mxu0 0.0
    %119 = vmatpush2.msra.mxu0 0.0
    %120 = vmatprep.subr.mxu0 0.0
    %121 = vmatpush2.msra.mxu0 0.0
    %122 = vmatprep.subr.mxu0 0.0
    %123 = vmatpush2.msra.mxu0 0.0
    %124 = vmatprep.subr.mxu0 0.0
    %125 = vmatpush2.msra.mxu0 0.0
    %126 = vmatprep.subr.mxu0 0.0
    %127 = vmatpush2.msra.mxu0 0.0
    %128 = vmatprep.subr.mxu0 0.0
    %129 = vmatpush2.msra.mxu0 0.0
    %130 = vmatprep.subr.mxu0 0.0
    %131 = vmatpush2.msra.mxu0 0.0
    %132 = vmatprep.subr.mxu0 0.0
    %133 = vmatpush2.msra.mxu0 0.0
    %134 = vmatprep.subr.mxu0 0.0
    %135 = vmatpush2.msra.mxu0 0.0
    %136 = vmatprep.subr.mxu0 0.0
    %137 = vmatpush2.msra.mxu0 0.0
    %138 = vmatprep.subr.mxu0 0.0
    %139 = vmatpush2.msra.mxu0 0.0
    %140 = vmatprep.subr.mxu0 0.0
    %141 = vmatpush2.msra.mxu0 0.0
    %142 = vmatprep.subr.mxu0 0.0
    %143 = vmatpush2.msra.mxu0 0.0
    %144 = vmatprep.subr.mxu0 0.0
    %145 = vmatpush2.msra.mxu0 0.0
    %146 = vmatprep.subr.mxu0 0.0
    %147 = vmatpush2.msra.mxu0 0.0
    %148 = vmatprep.subr.mxu0 0.0
    %149 = vmatpush2.msra.mxu0 0.0
    %150 = vmatprep.mubr.f32.mxu0 0.0
    %151 = vmatmul.mubr.f32.gmra.mxu0 %v41
    %v152 = vpop.f32.mrf.mxu0
    %v153 = vadd.f32 %v79, %v152
    %v154 = vpop.f32.mrf.mxu0
    %v155 = vadd.f32 %v83, %v154
    %156 = vdwg.mxu0
    %v157 = vmul.f32 %v155, 0.5
    %v158 = vmul.f32 %v155, 0.70710677
    %v159 = vand.u32 2147483647, %v158
    %v160 = vmul.f32 %v159, 0.3275911
    %v161 = vadd.f32 %v160, 1.0
    %v162 = vrcp.pop %v161
    %v163 = vmul.f32 %v162, 1.0614054
    %v164 = vadd.f32 %v163, -1.4531521
    %v165 = vmul.f32 %v164, %v162
    %v166 = vadd.f32 %v165, 1.4214138
    %v167 = vmul.f32 %v166, %v162
    %v168 = vadd.f32 %v167, -0.28449672
    %v169 = vmul.f32 %v168, %v162
    %v170 = vadd.f32 %v169, 0.2548296
    %v171 = vmul.f32 %v170, %v162
    %v172 = vmul.f32 %v159, %v159
    %v173 = vsub.f32 0.0, %v172
    %v174 = vmul.f32 %v173, 1.442695
    %v175 = vpow.pop %v174
    %v176 = vmul.f32 %v171, %v175
    %v177 = vsub.f32 1.0, %v176
    %vm178 = vcmp.ge.f32.partialorder %v158, 0.0
    %v179 = vsub.f32 0.0, %v177
    %v180 = vsel %vm178, %v177, %v179
    %v181 = vadd.f32 %v180, 1.0
    %v182 = vmul.f32 %v157, %v181
    %v183 = vmul.f32 %v153, %v182
    %184 = vst [vmem:[#allocation7] sm:$0xff] %v183
    // Predicated region
    $region22: #{tpu_custom_call.1} parent=1 // pred_check
      _
    $region23: #{tpu_custom_call.1} parent=1 // pred_check_branch
      %186 = sbr.rel (0) target = $region25
    $region24: #{tpu_custom_call.1} parent=1 // pred_region
      %s188 = ssub.s32 128, 128
      %189 = vsyncadd [#allocation4], %s188
      %s191 = sshll.u32 [#allocation7], 4
      %s192 = int_to_ptr.vmem [resolvable:$true] %s191
      %194 = dma.vmem_to_hbm [thread:$0]  %s192, 128, %s3, [#allocation4]
    $region25: #{tpu_custom_call.1} parent=1 // pred_fallthru
      _
    // Predicated region
    $region26: #{tpu_custom_call.1} parent=1 // pred_check
      _
    $region27: #{tpu_custom_call.1} parent=1 // pred_check_branch
      %196 = sbr.rel (0) target = $region29
    $region28: #{tpu_custom_call.1} parent=1 // pred_region
      %197 = dma.done [#allocation4], 128
    $region29: #{tpu_custom_call.1} parent=1 // pred_fallthru
      _
    %198 = vsyncpa [#allocation3], 1
    %199 = vsyncpa [#allocation6], 1
    %200 = vsyncpa [#allocation4], 1

</llo_original>
